<compile_context>
chip_gen: v6e
topology: v6e:2x2x1
jax: 0.10.0
libtpu: 0.0.40
codegen_flags: <defaults>
</compile_context>

<pallas_src>
import math

import jax
import jax.numpy as jnp
from jax.experimental import pallas as pl
from jax.experimental.pallas import tpu as pltpu


def _round_up(x, m):
    return ((x + m - 1) // m) * m


def _tpu_generation():
    try:
        kind = jax.devices()[0].device_kind.lower()
    except Exception:
        return "unknown"
    if "v7" in kind:
        return "v7x"
    if "v6" in kind:
        return "v6e"
    if "v5 lite" in kind or "v5e" in kind or "v5litepod" in kind:
        return "v5e"
    if "v5" in kind:  # v5p: 128 MiB VMEM -> large-tile class
        return "v5p"
    return "unknown"


# Per-generation tuning: tile caps, scoped-VMEM limit, input pipeline depth,
# tanh compute dtype.
_TUNE = {
    "v5e":     dict(tm=512,  tn=512,  tk=1024, vmem=64 << 20, bufs=2, tanh_bf16=False),
    "v5p":     dict(tm=1024, tn=1024, tk=512,  vmem=96 << 20, bufs=2, tanh_bf16=False),
    "v6e":     dict(tm=1024, tn=2048, tk=512,  vmem=96 << 20, bufs=3, tanh_bf16=True),
    "v7x":     dict(tm=1024, tn=1024, tk=512,  vmem=44 << 20, bufs=2, tanh_bf16=True),
    "unknown": dict(tm=512,  tn=512,  tk=512,  vmem=None,     bufs=2, tanh_bf16=False),
}


def _choose_tile(d_aligned, align, cap):
    """d_aligned is a multiple of `align`.  Return the largest tile (multiple
    of `align`, <= cap) whose padding waste on this axis is <= 12.5%.
    t == align always gives zero waste, so the scan terminates."""
    cap = max(align, (cap // align) * align)
    hi = max(align, min(cap, d_aligned))
    t = hi
    while t > align:
        if _round_up(d_aligned, t) - d_aligned <= d_aligned // 8:
            return t
        t -= align
    return align


def _in_spec(shape, index_map, nbuf):
    if nbuf > 2:
        try:
            return pl.BlockSpec(shape, index_map, pipeline_mode=pl.Buffered(nbuf))
        except Exception:
            pass  # older JAX without pipeline_mode / Buffered
    return pl.BlockSpec(shape, index_map)


# ---------------- Pass 1: W -> tanh(W) in bf16 (tiled elementwise) -----------

def _make_tanh_kernel(compute_dtype):
    def kernel(w_ref, o_ref):
        w = w_ref[...].astype(compute_dtype)
        o_ref[...] = jnp.tanh(w).astype(o_ref.dtype)
    return kernel


def _tanh_bf16(w_pad, tk, tn, *, compute_dtype, vmem_limit):
    Kp, Np = w_pad.shape
    return pl.pallas_call(
        _make_tanh_kernel(compute_dtype),
        out_shape=jax.ShapeDtypeStruct((Kp, Np), jnp.bfloat16),
        grid=(Kp // tk, Np // tn),
        in_specs=[pl.BlockSpec((tk, tn), lambda i, j: (i, j))],
        out_specs=pl.BlockSpec((tk, tn), lambda i, j: (i, j)),
        compiler_params=pltpu.CompilerParams(
            dimension_semantics=("parallel", "parallel"),
            vmem_limit_bytes=vmem_limit),
    )(w_pad)


# ---------------- Pass 2: tiled matmul with f32 VMEM accumulator -------------

def _matmul_kernel(x_ref, w_ref, o_ref, acc_ref):
    @pl.when(pl.program_id(2) == 0)
    def _():
        acc_ref[...] = jnp.zeros_like(acc_ref)

    acc_ref[...] += jnp.dot(x_ref[...], w_ref[...],
                            preferred_element_type=jnp.float32)

    @pl.when(pl.program_id(2) == pl.num_programs(2) - 1)
    def _():
        o_ref[...] = acc_ref[...].astype(o_ref.dtype)


def _matmul(x_bf16, w_bf16, out_dtype, tm, tn, tk, *, nbuf, vmem_limit):
    Mp, Kp = x_bf16.shape
    _, Np = w_bf16.shape
    return pl.pallas_call(
        _matmul_kernel,
        out_shape=jax.ShapeDtypeStruct((Mp, Np), out_dtype),
        grid=(Mp // tm, Np // tn, Kp // tk),
        in_specs=[_in_spec((tm, tk), lambda i, j, k: (i, k), nbuf),
                  _in_spec((tk, tn), lambda i, j, k: (k, j), nbuf)],
        out_specs=pl.BlockSpec((tm, tn), lambda i, j, k: (i, j)),
        scratch_shapes=[pltpu.VMEM((tm, tn), jnp.float32)],
        compiler_params=pltpu.CompilerParams(
            dimension_semantics=("parallel", "parallel", "arbitrary"),
            vmem_limit_bytes=vmem_limit),
    )(x_bf16, w_bf16)


# ---------------- Public wrapper ---------------------------------------------

def bitlinear(x, weight, *, force_pallas=False):
    """y = x @ tanh(weight); x: (..., K), weight: (K, N)."""
    *lead, K = x.shape
    Kw, N = weight.shape
    assert K == Kw, f"in_features mismatch: {K} vs {Kw}"
    M = math.prod(lead) if lead else 1

    # Tiny problems: XLA-fused matmul beats Pallas per-step overhead.
    if not force_pallas and M * K * N < (256 ** 3):
        return jnp.matmul(x, jnp.tanh(weight))

    gen = _tpu_generation()
    cfg = _TUNE.get(gen, _TUNE["unknown"])

    # Alignment-only padding (bf16 operands: sublane 16, lane 128), then tiles
    # with bounded (<=12.5%) extra padding per axis.
    Ma, Ka, Na = _round_up(M, 16), _round_up(K, 128), _round_up(N, 128)
    tm = _choose_tile(Ma, 16, cfg["tm"])
    tk = _choose_tile(Ka, 128, cfg["tk"])
    tn = _choose_tile(Na, 128, cfg["tn"])
    Mp, Kp, Np = _round_up(Ma, tm), _round_up(Ka, tk), _round_up(Na, tn)

    # v7x megacore: keep >=2 blocks across the two "parallel" grid axes so one
    # TensorCore doesn't idle (only triggers when both axes collapsed to 1).
    if gen == "v7x" and (Mp // tm) * (Np // tn) < 2:
        if tn >= 256 and tn % 256 == 0:
            tn //= 2
        elif tm >= 32 and tm % 32 == 0:
            tm //= 2

    x2d = x.reshape(M, K)
    # Pad directly in bf16 (single pass over the activation, half the buffer).
    x_bf16 = (jnp.zeros((Mp, Kp), jnp.bfloat16)
              .at[:M, :K].set(x2d.astype(jnp.bfloat16)))
    w_pad = jnp.zeros((Kp, Np), weight.dtype).at[:K, :N].set(weight)

    tanh_dtype = jnp.bfloat16 if cfg["tanh_bf16"] else jnp.float32
    w_bf16 = _tanh_bf16(w_pad, tk, tn, compute_dtype=tanh_dtype,
                        vmem_limit=cfg["vmem"])

    # Final dtype written inside the kernel; no post-kernel astype pass.
    out = _matmul(x_bf16, w_bf16, x.dtype, tm, tn, tk,
                  nbuf=cfg["bufs"], vmem_limit=cfg["vmem"])
    out = out[:M, :N]
    return out.reshape(*lead, N)


if __name__ == "__main__":
    # Shapes implied by the module: x (..., in_features), weight (in, out).
    batch, seq, in_features, out_features = 2, 8, 32, 32

    key = jax.random.PRNGKey(0)
    kx, kw = jax.random.split(key)
    x = jax.random.normal(kx, (batch, seq, in_features), dtype=jnp.float32)
    # Matches nn.Parameter(torch.randn(in, out) * 0.1) deterministically.
    weight = 0.1 * jax.random.normal(kw, (in_features, out_features),
                                     dtype=jnp.float32)

    # Force the Pallas path so the kernels are exercised even at toy shapes.
    y = bitlinear(x, weight, force_pallas=True)
    y = jax.block_until_ready(y)

    # Reference check (same semantics as torch.matmul(x, torch.tanh(W))).
    y_ref = jnp.matmul(x, jnp.tanh(weight))
    assert y.shape == (batch, seq, out_features)
    # bf16 MXU operands -> tolerance looser than the pure-f32 reference.
    err = float(jnp.max(jnp.abs(y - y_ref)))
    assert jnp.allclose(y, y_ref, atol=2e-2, rtol=2e-2), err
    print("KERNEL_OK")
</pallas_src>

<mosaic_0001>
module attributes {stable_mosaic.version = 11 : i64} {
  func.func @kernel(%arg0: i32, %arg1: i32, %arg2: memref<128x128xf32, #tpu.memory_space<vmem>>, %arg3: memref<128x128xbf16, #tpu.memory_space<vmem>>) attributes {dimension_semantics = [#tpu.dimension_semantics<parallel>, #tpu.dimension_semantics<parallel>], iteration_bounds = array<i64: 1, 1>, scalar_prefetch = 0 : i64, scratch_operands = 0 : i64, tpu.core_type = #tpu.core_type<tc>, window_params = [{transform_indices = @transform_0, window_bounds = array<i64: 128, 128>}, {transform_indices = @transform_1, window_bounds = array<i64: 128, 128>}]} {
    %c0 = arith.constant 0 : index
    %c0_0 = arith.constant 0 : index
    %0 = vector.load %arg2[%c0, %c0_0] : memref<128x128xf32, #tpu.memory_space<vmem>>, vector<128x128xf32>
    %1 = math.tanh %0 : vector<128x128xf32>
    %2 = arith.truncf %1 : vector<128x128xf32> to vector<128x128xbf16>
    %c0_1 = arith.constant 0 : index
    %c0_2 = arith.constant 0 : index
    %3 = vector.load %arg3[%c0_1, %c0_2] : memref<128x128xbf16, #tpu.memory_space<vmem>>, vector<128x128xbf16>
    tpu.vector_store %arg3[%c0_1, %c0_2], %2 {strides = array<i32>} : memref<128x128xbf16, #tpu.memory_space<vmem>>, vector<128x128xbf16>,
    return
  }
  func.func @transform_0(%arg0: i32, %arg1: i32) -> (i32, i32) {
    %c0_i32 = arith.constant 0 : i32
    return %arg0, %arg1 : i32, i32
  }
  func.func @transform_1(%arg0: i32, %arg1: i32) -> (i32, i32) {
    %c0_i32 = arith.constant 0 : i32
    return %arg0, %arg1 : i32, i32
  }
}

</mosaic_0001>

<llo_original>
// kernel: tpu_custom_call.1
$region0: #{tpu_custom_call.1}
  #allocation0 [shape = 'u32[]', space=smem, size = 0x4, offset = 0x4, fixed_abs, tag = 'smem constant byte address 0x4 - core index']
  #allocation1 [shape = 'u32[144,128]{1,0:T(1,128)}', space=vmem, size = 0x12000, scoped, tag = 'internal scratch']
  %s0 = inlined_call_operand.hbm [shape: f32[128,128], index: 0, kind: input, shape index: {}]
  %s1 = inlined_call_operand.hbm [shape: bf16[128,128], index: 1, kind: output, shape index: {}]
  %s2 = sld [smem:[#allocation0]]
  $region18: #{tpu_custom_call.1} parent=0
    _
  %s4 = ssub.s32 1, %s2
  %s5 = scalar_select 0, %s4, %s2
  $region1: #{tpu_custom_call.1} parent=0
    #allocation2 [shape = 'u8[65536]{0}', space=vmem, size = 0x10000, scoped, tag = 'input window, operand 0, single buffered']
    #allocation3 [shape = 's32[1]{0}', space=sflag, size = 0x4, scoped, tag = 'scoped memory for tpu_custom_call.1']
    #allocation4 [shape = 's32[1]{0}', space=sflag, size = 0x4, scoped, tag = 'scoped memory for tpu_custom_call.1']
    #allocation5 [shape = 'u8[32768]{0}', space=vmem, size = 0x8000, scoped, tag = 'output window, operand 0, single buffered']
    %6 = vsyncpa [#allocation3], 0
    %7 = vsyncpa [#allocation4], 0
    // Predicated region
    $region2: #{tpu_custom_call.1} parent=1 // pred_check
      _
    $region3: #{tpu_custom_call.1} parent=1 // pred_check_branch
      %9 = sbr.rel (0) target = $region5
    $region4: #{tpu_custom_call.1} parent=1 // pred_region
      %s11 = ssub.s32 2048, 2048
      %12 = vsyncadd [#allocation3], %s11
      %s13 = sshll.u32 [#allocation2], 4
      %s14 = int_to_ptr.vmem [resolvable:$true] %s13
      %19 = dma.hbm_to_vmem [thread:$0]  %s0, 2048, %s14, [#allocation3], 128, 128, 8
    $region5: #{tpu_custom_call.1} parent=1 // pred_fallthru
      _
    // Predicated region
    $region6: #{tpu_custom_call.1} parent=1 // pred_check
      _
    $region7: #{tpu_custom_call.1} parent=1 // pred_check_branch
      %21 = sbr.rel (0) target = $region9
    $region8: #{tpu_custom_call.1} parent=1 // pred_region
      %22 = dma.done [#allocation3], 2048
    $region9: #{tpu_custom_call.1} parent=1 // pred_fallthru
      _
    %v23 = vld [vmem:[#allocation2] sm:$0xff]
    %v24 = vld [vmem:[#allocation2 + $0x8] sm:$0xff]
    %v25 = vld [vmem:[#allocation2 + $0x10] sm:$0xff]
    %v26 = vld [vmem:[#allocation2 + $0x18] sm:$0xff]
    %v27 = vld [vmem:[#allocation2 + $0x20] sm:$0xff]
    %v28 = vld [vmem:[#allocation2 + $0x28] sm:$0xff]
    %v29 = vld [vmem:[#allocation2 + $0x30] sm:$0xff]
    %v30 = vld [vmem:[#allocation2 + $0x38] sm:$0xff]
    %v31 = vld [vmem:[#allocation2 + $0x40] sm:$0xff]
    %v32 = vld [vmem:[#allocation2 + $0x48] sm:$0xff]
    %v33 = vld [vmem:[#allocation2 + $0x50] sm:$0xff]
    %v34 = vld [vmem:[#allocation2 + $0x58] sm:$0xff]
    %v35 = vld [vmem:[#allocation2 + $0x60] sm:$0xff]
    %v36 = vld [vmem:[#allocation2 + $0x68] sm:$0xff]
    %v37 = vld [vmem:[#allocation2 + $0x70] sm:$0xff]
    %v38 = vld [vmem:[#allocation2 + $0x78] sm:$0xff]
    %v39 = vtanh.pop %v23
    %v40 = vtanh.pop %v24
    %v41 = vtanh.pop %v25
    %v42 = vtanh.pop %v26
    %v43 = vtanh.pop %v27
    %v44 = vtanh.pop %v28
    %v45 = vtanh.pop %v29
    %v46 = vtanh.pop %v30
    %v47 = vtanh.pop %v31
    %v48 = vtanh.pop %v32
    %v49 = vtanh.pop %v33
    %v50 = vtanh.pop %v34
    %v51 = vtanh.pop %v35
    %v52 = vtanh.pop %v36
    %v53 = vtanh.pop %v37
    %v54 = vtanh.pop %v38
    %v55 = vpack.c.bf16 %v40, %v39
    %v56 = vpack.c.bf16 %v42, %v41
    %v57 = vpack.c.bf16 %v44, %v43
    %v58 = vpack.c.bf16 %v46, %v45
    %v59 = vpack.c.bf16 %v48, %v47
    %v60 = vpack.c.bf16 %v50, %v49
    %v61 = vpack.c.bf16 %v52, %v51
    %v62 = vpack.c.bf16 %v54, %v53
    %v71 = vunpack.c.l.b16 %v55
    %v72 = vunpack.c.h.b16 %v55
    %v73 = vunpack.c.l.b16 %v56
    %v74 = vunpack.c.h.b16 %v56
    %v75 = vunpack.c.l.b16 %v57
    %v76 = vunpack.c.h.b16 %v57
    %v77 = vunpack.c.l.b16 %v58
    %v78 = vunpack.c.h.b16 %v58
    %v79 = vunpack.c.l.b16 %v59
    %v80 = vunpack.c.h.b16 %v59
    %v81 = vunpack.c.l.b16 %v60
    %v82 = vunpack.c.h.b16 %v60
    %v83 = vunpack.c.l.b16 %v61
    %v84 = vunpack.c.h.b16 %v61
    %v85 = vunpack.c.l.b16 %v62
    %v86 = vunpack.c.h.b16 %v62
    %v87 = vpack.c.b16 %v71, %v71
    %v88 = vpack.c.b16 %v72, %v72
    %v89 = vpack.c.b16 %v73, %v73
    %v90 = vpack.c.b16 %v74, %v74
    %v91 = vpack.c.b16 %v75, %v75
    %v92 = vpack.c.b16 %v76, %v76
    %v93 = vpack.c.b16 %v77, %v77
    %v94 = vpack.c.b16 %v78, %v78
    %v95 = vpack.c.b16 %v79, %v79
    %v96 = vpack.c.b16 %v80, %v80
    %v97 = vpack.c.b16 %v81, %v81
    %v98 = vpack.c.b16 %v82, %v82
    %v99 = vpack.c.b16 %v83, %v83
    %v100 = vpack.c.b16 %v84, %v84
    %v101 = vpack.c.b16 %v85, %v85
    %v102 = vpack.c.b16 %v86, %v86
    %119 = vst [vmem:[#allocation5] sm:$0xf] %v87
    %120 = vst [vmem:[#allocation5 + $0x4] sm:$0xf] %v88
    %121 = vst [vmem:[#allocation5 + $0x8] sm:$0xf] %v89
    %122 = vst [vmem:[#allocation5 + $0xc] sm:$0xf] %v90
    %123 = vst [vmem:[#allocation5 + $0x10] sm:$0xf] %v91
    %124 = vst [vmem:[#allocation5 + $0x14] sm:$0xf] %v92
    %125 = vst [vmem:[#allocation5 + $0x18] sm:$0xf] %v93
    %126 = vst [vmem:[#allocation5 + $0x1c] sm:$0xf] %v94
    %127 = vst [vmem:[#allocation5 + $0x20] sm:$0xf] %v95
    %128 = vst [vmem:[#allocation5 + $0x24] sm:$0xf] %v96
    %129 = vst [vmem:[#allocation5 + $0x28] sm:$0xf] %v97
    %130 = vst [vmem:[#allocation5 + $0x2c] sm:$0xf] %v98
    %131 = vst [vmem:[#allocation5 + $0x30] sm:$0xf] %v99
    %132 = vst [vmem:[#allocation5 + $0x34] sm:$0xf] %v100
    %133 = vst [vmem:[#allocation5 + $0x38] sm:$0xf] %v101
    %134 = vst [vmem:[#allocation5 + $0x3c] sm:$0xf] %v102
    // Predicated region
    $region10: #{tpu_custom_call.1} parent=1 // pred_check
      _
    $region11: #{tpu_custom_call.1} parent=1 // pred_check_branch
      %136 = sbr.rel (0) target = $region13
    $region12: #{tpu_custom_call.1} parent=1 // pred_region
      %s138 = ssub.s32 1024, 1024
      %139 = vsyncadd [#allocation4], %s138
      %s140 = sshll.u32 [#allocation5], 4
      %s141 = int_to_ptr.vmem [resolvable:$true] %s140
      %146 = dma.vmem_to_hbm [thread:$0]  %s141, 1024, %s1, [#allocation4], 64, 64, 4
    $region13: #{tpu_custom_call.1} parent=1 // pred_fallthru
      _
    // Predicated region
    $region14: #{tpu_custom_call.1} parent=1 // pred_check
      _
    $region15: #{tpu_custom_call.1} parent=1 // pred_check_branch
      %148 = sbr.rel (0) target = $region17
    $region16: #{tpu_custom_call.1} parent=1 // pred_region
      %149 = dma.done [#allocation4], 1024
    $region17: #{tpu_custom_call.1} parent=1 // pred_fallthru
      _
    %150 = vsyncpa [#allocation3], 1
    %151 = vsyncpa [#allocation4], 1

</llo_original>
